<compile_context>
chip_gen: v7x
topology: tpu7x:2x2x1
jax: 0.10.0
libtpu: 0.0.40
codegen_flags: <defaults>
</compile_context>

<pallas_src>
import math

import numpy as np
import jax
import jax.numpy as jnp
from jax.experimental import pallas as pl
from jax.experimental.pallas import tpu as pltpu

_LANE = 128
_SUBLANE = 8
_MAX_DMA_CHUNKS = 4  # a few concurrent DMAs keep several queues busy


def _row_chunks(rows, itemsize):
    """Split `rows` into up to _MAX_DMA_CHUNKS contiguous, sublane-aligned
    (start, size) chunks so several HBM->HBM DMAs can be in flight at once."""
    sub = _SUBLANE * max(1, 4 // max(1, itemsize))  # 8 f32 / 16 bf16 / 32 i8
    if rows < 2 * sub:
        return [(0, rows)]
    n_chunks = min(_MAX_DMA_CHUNKS, rows // sub)
    base = (rows // n_chunks // sub) * sub
    chunks = []
    start = 0
    for _ in range(n_chunks - 1):
        chunks.append((start, base))
        start += base
    if rows - start > 0:
        chunks.append((start, rows - start))
    return chunks


def _make_chunked_copy_kernel(chunks):
    """Kernel: start all chunk DMAs (HBM->HBM), then wait for all of them."""

    def kernel(x_ref, o_ref, sems):
        copies = []
        for i, (start, size) in enumerate(chunks):
            cp = pltpu.make_async_copy(
                x_ref.at[pl.ds(start, size), :],
                o_ref.at[pl.ds(start, size), :],
                sems.at[i],
            )
            cp.start()
            copies.append(cp)
        for cp in copies:
            cp.wait()

    return kernel


def _whole_copy_kernel(x_ref, o_ref, sem):
    cp = pltpu.make_async_copy(x_ref, o_ref, sem)
    cp.start()
    cp.wait()


def _pallas_copy(x):
    """Materialize a fresh copy of `x` via direct HBM->HBM DMA.

    No VMEM staging, no grid: an identity copy has zero compute, so driving
    the DMA engine directly keeps it at the HBM roofline on v5e/v6e/v7x.
    Returns either a lane-dense (rows, 128) slab or an array in x's original
    shape; callers reshape (metadata-only) to the target view shape.
    """
    n = x.size
    itemsize = x.dtype.itemsize
    bytes_accessed = 2 * n * itemsize  # read + write of the whole array

    if n % _LANE == 0:
        rows = n // _LANE
        flat2d = jnp.reshape(x, (rows, _LANE))
        chunks = _row_chunks(rows, itemsize)
        return pl.pallas_call(
            _make_chunked_copy_kernel(chunks),
            out_shape=jax.ShapeDtypeStruct((rows, _LANE), flat2d.dtype),
            in_specs=[pl.BlockSpec(memory_space=pl.ANY)],
            out_specs=pl.BlockSpec(memory_space=pl.ANY),
            scratch_shapes=[pltpu.SemaphoreType.DMA((len(chunks),))],
            cost_estimate=pl.CostEstimate(
                flops=0, transcendentals=0, bytes_accessed=bytes_accessed
            ),
        )(flat2d)

    # Awkward element counts: single whole-array DMA on the original shape.
    return pl.pallas_call(
        _whole_copy_kernel,
        out_shape=jax.ShapeDtypeStruct(x.shape, x.dtype),
        in_specs=[pl.BlockSpec(memory_space=pl.ANY)],
        out_specs=pl.BlockSpec(memory_space=pl.ANY),
        scratch_shapes=[pltpu.SemaphoreType.DMA(())],
        cost_estimate=pl.CostEstimate(
            flops=0, transcendentals=0, bytes_accessed=bytes_accessed
        ),
    )(x)


class View:
    """JAX/Pallas equivalent of the PyTorch View module.

    forward(x) == x.view(x.shape[0], *self.shape)

    Default path is metadata-only (jnp.reshape), matching torch .view cost
    semantics exactly.  `use_pallas_copy=True` materializes a fresh buffer via
    the HBM->HBM DMA kernel (never donates / invalidates the input).
    """

    def __init__(self, *shape, use_pallas_copy=False):
        self.shape = shape
        self.use_pallas_copy = use_pallas_copy

    def _resolve_shape(self, numel_per_batch):
        shape = list(self.shape)
        neg = [i for i, s in enumerate(shape) if s == -1]
        if len(neg) > 1:
            raise ValueError("only one -1 allowed in view shape")
        if neg:
            known = 1
            for i, s in enumerate(shape):
                if i != neg[0]:
                    known *= s
            shape[neg[0]] = numel_per_batch // known
        if math.prod(shape) != numel_per_batch:
            raise ValueError(
                f"view shape {self.shape} incompatible with {numel_per_batch} "
                "elements per batch"
            )
        return tuple(shape)

    def __call__(self, x):
        batch = x.shape[0]
        numel_per_batch = math.prod(x.shape[1:]) if x.ndim > 1 else 1
        target = (batch,) + self._resolve_shape(numel_per_batch)

        if self.use_pallas_copy:
            y = _pallas_copy(x)
            return jnp.reshape(y, target)

        # Metadata-only reshape, identical to torch .view semantics.
        return jnp.reshape(x, target)


if __name__ == "__main__":
    key = jax.random.PRNGKey(0)
    # Small NCHW input consistent with a typical cGAN feature map.
    x = jax.random.normal(key, (2, 4, 16, 16), dtype=jnp.float32)
    x_host = np.asarray(x)

    # --- Default metadata-only path (recommended) ---
    view_flat = View(-1)
    y_flat = jax.block_until_ready(view_flat(x))
    assert y_flat.shape == (2, 4 * 16 * 16)
    assert np.allclose(np.asarray(y_flat), x_host.reshape(2, -1))

    view_2d = View(16, 64)
    y_2d = jax.block_until_ready(view_2d(x))
    assert y_2d.shape == (2, 16, 64)
    assert np.allclose(np.asarray(y_2d), x_host.reshape(2, 16, 64))

    # --- Pallas HBM->HBM DMA copy path (no VMEM staging, no aliasing) ---
    view_pallas = View(16, 64, use_pallas_copy=True)
    y_p = jax.block_until_ready(view_pallas(x))
    assert y_p.shape == (2, 16, 64)
    assert np.allclose(np.asarray(y_p), x_host.reshape(2, 16, 64))
    # Input is NOT donated/invalidated by the copy path (torch .view semantics).
    assert np.allclose(np.asarray(x), x_host)

    # Larger input: rows=512 -> 4 concurrent 128-row DMA chunks.
    key2 = jax.random.PRNGKey(1)
    x_big = jax.random.normal(key2, (4, 16, 32, 32), dtype=jnp.float32)
    x_big_host = np.asarray(x_big)
    view_big = View(-1, use_pallas_copy=True)
    y_big = jax.block_until_ready(view_big(x_big))
    assert y_big.shape == (4, 16 * 32 * 32)
    assert np.allclose(np.asarray(y_big), x_big_host.reshape(4, -1))

    # Awkward element count (not a multiple of 128): whole-array DMA path.
    key3 = jax.random.PRNGKey(2)
    x_odd = jax.random.normal(key3, (2, 3, 5, 7), dtype=jnp.float32)
    x_odd_host = np.asarray(x_odd)
    view_odd = View(-1, use_pallas_copy=True)
    y_odd = jax.block_until_ready(view_odd(x_odd))
    assert y_odd.shape == (2, 3 * 5 * 7)
    assert np.allclose(np.asarray(y_odd), x_odd_host.reshape(2, -1))

    print("KERNEL_OK")
</pallas_src>

<mosaic_0001>
module attributes {stable_mosaic.version = 11 : i64} {
  func.func @kernel(%arg0: memref<16x128xf32, #tpu.memory_space<any>>, %arg1: memref<16x128xf32, #tpu.memory_space<any>>, %arg2: memref<2x!tpu.dma_semaphore, #tpu.memory_space<semaphore_mem>>) attributes {dimension_semantics = [], scalar_prefetch = 0 : i64, scratch_operands = 1 : i64, tpu.core_type = #tpu.core_type<tc>} {
    %c0_i32 = arith.constant 0 : i32
    %c0_i32_0 = arith.constant 0 : i32
    %c0_i32_1 = arith.constant 0 : i32
    %0 = tpu.memref_slice %arg0[%c0_i32_0, %c0_i32_1] : memref<16x128xf32, #tpu.memory_space<any>> -> memref<8x128xf32, #tpu.memory_space<any>>
    %c0_i32_2 = arith.constant 0 : i32
    %c0_i32_3 = arith.constant 0 : i32
    %1 = tpu.memref_slice %arg1[%c0_i32_2, %c0_i32_3] : memref<16x128xf32, #tpu.memory_space<any>> -> memref<8x128xf32, #tpu.memory_space<any>>
    %2 = tpu.memref_slice %arg2[%c0_i32] : memref<2x!tpu.dma_semaphore, #tpu.memory_space<semaphore_mem>> -> memref<1x!tpu.dma_semaphore, #tpu.memory_space<semaphore_mem>>
    %3 = tpu.memref_squeeze %2 : memref<1x!tpu.dma_semaphore, #tpu.memory_space<semaphore_mem>> -> memref<!tpu.dma_semaphore, #tpu.memory_space<semaphore_mem>>
    tpu.enqueue_dma source(%0 : memref<8x128xf32, #tpu.memory_space<any>>) target(%1 : memref<8x128xf32, #tpu.memory_space<any>>) target_semaphore(%3 : memref<!tpu.dma_semaphore, #tpu.memory_space<semaphore_mem>>)
    %c1_i32 = arith.constant 1 : i32
    %c8_i32 = arith.constant 8 : i32
    %c0_i32_4 = arith.constant 0 : i32
    %4 = tpu.memref_slice %arg0[%c8_i32, %c0_i32_4] : memref<16x128xf32, #tpu.memory_space<any>> -> memref<8x128xf32, #tpu.memory_space<any>>
    %c8_i32_5 = arith.constant 8 : i32
    %c0_i32_6 = arith.constant 0 : i32
    %5 = tpu.memref_slice %arg1[%c8_i32_5, %c0_i32_6] : memref<16x128xf32, #tpu.memory_space<any>> -> memref<8x128xf32, #tpu.memory_space<any>>
    %6 = tpu.memref_slice %arg2[%c1_i32] : memref<2x!tpu.dma_semaphore, #tpu.memory_space<semaphore_mem>> -> memref<1x!tpu.dma_semaphore, #tpu.memory_space<semaphore_mem>>
    %7 = tpu.memref_squeeze %6 : memref<1x!tpu.dma_semaphore, #tpu.memory_space<semaphore_mem>> -> memref<!tpu.dma_semaphore, #tpu.memory_space<semaphore_mem>>
    tpu.enqueue_dma source(%4 : memref<8x128xf32, #tpu.memory_space<any>>) target(%5 : memref<8x128xf32, #tpu.memory_space<any>>) target_semaphore(%7 : memref<!tpu.dma_semaphore, #tpu.memory_space<semaphore_mem>>)
    %c0_i32_7 = arith.constant 0 : i32
    %c0_i32_8 = arith.constant 0 : i32
    %c0_i32_9 = arith.constant 0 : i32
    %8 = tpu.memref_slice %arg0[%c0_i32_8, %c0_i32_9] : memref<16x128xf32, #tpu.memory_space<any>> -> memref<8x128xf32, #tpu.memory_space<any>>
    %c0_i32_10 = arith.constant 0 : i32
    %c0_i32_11 = arith.constant 0 : i32
    %9 = tpu.memref_slice %arg1[%c0_i32_10, %c0_i32_11] : memref<16x128xf32, #tpu.memory_space<any>> -> memref<8x128xf32, #tpu.memory_space<any>>
    %10 = tpu.memref_slice %arg2[%c0_i32_7] : memref<2x!tpu.dma_semaphore, #tpu.memory_space<semaphore_mem>> -> memref<1x!tpu.dma_semaphore, #tpu.memory_space<semaphore_mem>>
    %11 = tpu.memref_squeeze %10 : memref<1x!tpu.dma_semaphore, #tpu.memory_space<semaphore_mem>> -> memref<!tpu.dma_semaphore, #tpu.memory_space<semaphore_mem>>
    tpu.wait_dma2 semaphore(%11 : memref<!tpu.dma_semaphore, #tpu.memory_space<semaphore_mem>>) src(%8 : memref<8x128xf32, #tpu.memory_space<any>>) dst(%9 : memref<8x128xf32, #tpu.memory_space<any>>)
    %c1_i32_12 = arith.constant 1 : i32
    %c8_i32_13 = arith.constant 8 : i32
    %c0_i32_14 = arith.constant 0 : i32
    %12 = tpu.memref_slice %arg0[%c8_i32_13, %c0_i32_14] : memref<16x128xf32, #tpu.memory_space<any>> -> memref<8x128xf32, #tpu.memory_space<any>>
    %c8_i32_15 = arith.constant 8 : i32
    %c0_i32_16 = arith.constant 0 : i32
    %13 = tpu.memref_slice %arg1[%c8_i32_15, %c0_i32_16] : memref<16x128xf32, #tpu.memory_space<any>> -> memref<8x128xf32, #tpu.memory_space<any>>
    %14 = tpu.memref_slice %arg2[%c1_i32_12] : memref<2x!tpu.dma_semaphore, #tpu.memory_space<semaphore_mem>> -> memref<1x!tpu.dma_semaphore, #tpu.memory_space<semaphore_mem>>
    %15 = tpu.memref_squeeze %14 : memref<1x!tpu.dma_semaphore, #tpu.memory_space<semaphore_mem>> -> memref<!tpu.dma_semaphore, #tpu.memory_space<semaphore_mem>>
    tpu.wait_dma2 semaphore(%15 : memref<!tpu.dma_semaphore, #tpu.memory_space<semaphore_mem>>) src(%12 : memref<8x128xf32, #tpu.memory_space<any>>) dst(%13 : memref<8x128xf32, #tpu.memory_space<any>>)
    return
  }
}

</mosaic_0001>

<llo_original>
// kernel: tpu_custom_call.1
$region0: #{tpu_custom_call.1}
  #allocation0 [shape = 'u32[]', space=smem, size = 0x4, offset = 0x4, fixed_abs, tag = 'smem constant byte address 0x4 - core index']
  #allocation1 [shape = 'u32[144,128]{1,0:T(1,128)}', space=vmem, size = 0x12000, scoped, tag = 'internal scratch']
  #allocation2 [shape = 's32[2]{0}', space=sflag, size = 0x8, scoped, tag = 'scratch operand']
  #allocation3 [shape = 's32[]', space=sflag, size = 0x4, offset = 0, fixed_abs, tag = 'sflag constant byte address 0x0 - dummy sync flag']
  #allocation4 [shape = 'u32[0]{0}', space=smem, size = 0, offset = 0, fixed_abs, tag = 'smem constant byte address 0x0 - null']
  #allocation5 [shape = 's32[]', space=sflag, size = 0x4, offset = 0, fixed_abs, tag = 'sflag constant byte address 0x0 - dummy sync flag']
  #allocation6 [shape = 'u32[0]{0}', space=smem, size = 0, offset = 0, fixed_abs, tag = 'smem constant byte address 0x0 - null']
  %s0 = inlined_call_operand.hbm [shape: f32[16,128], index: 0, kind: input, shape index: {}]
  %s1 = inlined_call_operand.hbm [shape: f32[16,128], index: 1, kind: output, shape index: {}]
  %s2 = sld [smem:[#allocation0]]
  $region2: #{tpu_custom_call.1} parent=0
    _
  %s4 = ssub.s32 1, %s2
  %s5 = scalar_select 0, %s4, %s2
  %s7 = sshll.u32 1, 14
  %s8 = sxor.u32 4294967295, %s7
  %s11 = sshll.u32 3, 24
  %s12 = sxor.u32 4294967295, %s11
  %s13 = sand.u32 0, %s12
  %s15 = sor.u32 %s13, 0
  %18 = dma.general %s0, 128, %s1, [#allocation2], [#allocation3], [#allocation4], %s15, 0
  %s19 = scalar_lea.hbm %s0, 128
  %s20 = scalar_lea.hbm %s1, 128
  %s21 = scalar_lea.sflag [#allocation2], 1
  %s23 = sshll.u32 1, 14
  %s24 = sxor.u32 4294967295, %s23
  %s27 = sshll.u32 3, 24
  %s28 = sxor.u32 4294967295, %s27
  %s29 = sand.u32 0, %s28
  %s31 = sor.u32 %s29, 0
  %34 = dma.general %s19, 128, %s20, %s21, [#allocation5], [#allocation6], %s31, 0
  %s35 = smul.u32 8, 1
  %s36 = sshll.u32 %s35, 4
  %37 = dma.done [#allocation2], %s36
  %s38 = sshll.u32 %s35, 4
  %39 = dma.done %s21, %s38
  %40 = vsyncmov [#allocation2]
  %s41 = vpop.sfrf %40
  %p42 = scmp.eq.s32.totalorder %s41, 0
  %p43 = pneg %p42
  %45 = shalt.err (%p43)
  %s46 = scalar_lea.sflag [#allocation2], 1
  %47 = vsyncmov %s46
  %s48 = vpop.sfrf %47
  %p49 = scmp.eq.s32.totalorder %s48, 0
  %p50 = pneg %p49
  %52 = shalt.err (%p50)

</llo_original>
